<compile_context>
chip_gen: v5e
topology: v5e:2x2
jax: 0.10.0
libtpu: 0.0.40
codegen_flags: <defaults>
</compile_context>

<pallas_src>
import math

import jax
import jax.numpy as jnp
from jax.experimental import pallas as pl
from jax.experimental.pallas import tpu as pltpu


def _rnn_seq_kernel(x_ref, h0_ref, wx_ref, wh_ref, b_ref,
                    hout_ref, logp_ref, h_scr):
    """One grid step = one RNN timestep for one batch block.

    x_ref  : (1, bb, I)      per-step input slice (pipelined over t)
    h0_ref : (bb, H)         initial hidden (read once at t == 0)
    wx_ref : (I, H+O)        merged [i2h | i2o] weights, input rows
    wh_ref : (H, H+O)        merged [i2h | i2o] weights, hidden rows
    b_ref  : (1, H+O)        merged bias
    h_scr  : (bb, H) f32     VMEM-resident hidden state carried over t
    """
    t = pl.program_id(1)
    H = h_scr.shape[1]
    w_dtype = wx_ref.dtype

    @pl.when(t == 0)
    def _init():
        h_scr[...] = h0_ref[...].astype(jnp.float32)

    x = x_ref[0]                       # (bb, I)
    h = h_scr[...]                     # (bb, H), f32

    # Single merged projection; columns [0:H] -> i2h, [H:H+O] -> i2o.
    # Both dots use h_{t-1} (pre-update hidden), matching the PyTorch cell.
    z = (jnp.dot(x.astype(w_dtype), wx_ref[...],
                 preferred_element_type=jnp.float32)
         + jnp.dot(h.astype(w_dtype), wh_ref[...],
                   preferred_element_type=jnp.float32)
         + b_ref[...].astype(jnp.float32))          # (bb, H+O), f32

    h_scr[...] = jnp.tanh(z[:, :H])                 # h_t

    @pl.when(t == pl.num_programs(1) - 1)
    def _finalize():
        hout_ref[...] = h_scr[...].astype(hout_ref.dtype)
        # log_softmax of the last step's i2o logits (stabilized, f32).
        o = z[:, H:]                                # (bb, O)
        m = jnp.max(o, axis=-1, keepdims=True)
        s = o - m
        lse = jnp.log(jnp.sum(jnp.exp(s), axis=-1, keepdims=True))
        logp_ref[...] = (s - lse).astype(logp_ref.dtype)


def rnn_sequence_forward(xs, h0, wx, wh, b, *, batch_block=None):
    """Run the RNN cell over a whole sequence in one fused Pallas kernel.

    xs : (T, B, I)   per-step inputs (f32 or bf16)
    h0 : (B, H)      initial hidden state
    wx : (I, H+O)    merged weights (input rows), transposed vs. PyTorch
    wh : (H, H+O)    merged weights (hidden rows)
    b  : (1, H+O)    merged bias

    Returns (h_T, log_probs_T): equivalent to applying the PyTorch RNN cell
    T times and keeping the last step's (hidden, output).
    """
    T, B, I = xs.shape
    H = h0.shape[1]
    HO = wx.shape[1]
    O = HO - H

    bb = B if batch_block is None else batch_block
    assert B % bb == 0, "batch_block must divide the batch size"
    nb = B // bb

    grid_spec = pltpu.PrefetchScalarGridSpec(
        num_scalar_prefetch=0,
        grid=(nb, T),
        in_specs=[
            pl.BlockSpec((1, bb, I), lambda nbi, t: (t, nbi, 0)),   # x_t
            pl.BlockSpec((bb, H), lambda nbi, t: (nbi, 0)),         # h0
            pl.BlockSpec((I, HO), lambda nbi, t: (0, 0)),           # Wx (resident)
            pl.BlockSpec((H, HO), lambda nbi, t: (0, 0)),           # Wh (resident)
            pl.BlockSpec((1, HO), lambda nbi, t: (0, 0)),           # bias (resident)
        ],
        out_specs=(
            pl.BlockSpec((bb, H), lambda nbi, t: (nbi, 0)),         # final hidden
            pl.BlockSpec((bb, O), lambda nbi, t: (nbi, 0)),         # final log-probs
        ),
        scratch_shapes=[pltpu.VMEM((bb, H), jnp.float32)],
    )

    return pl.pallas_call(
        _rnn_seq_kernel,
        grid_spec=grid_spec,
        out_shape=(jax.ShapeDtypeStruct((B, H), jnp.float32),
                   jax.ShapeDtypeStruct((B, O), jnp.float32)),
        compiler_params=pltpu.CompilerParams(
            dimension_semantics=("parallel", "arbitrary")),
    )(xs, h0, wx, wh, b)


def rnn_forward(inp, hidden, wx, wh, b):
    """One RNN-cell step == RNN.forward(input, hidden) of the PyTorch module."""
    return rnn_sequence_forward(inp[None], hidden, wx, wh, b)


def init_params(key, input_size, hidden_size, output_size, dtype=jnp.float32):
    """PyTorch-Linear-style init (uniform +/- 1/sqrt(fan_in)), merged layout."""
    C = input_size + hidden_size
    bound = 1.0 / math.sqrt(C)
    k1, k2, k3, k4 = jax.random.split(key, 4)
    w_i2h = jax.random.uniform(k1, (C, hidden_size), jnp.float32, -bound, bound)
    b_i2h = jax.random.uniform(k2, (1, hidden_size), jnp.float32, -bound, bound)
    w_i2o = jax.random.uniform(k3, (C, output_size), jnp.float32, -bound, bound)
    b_i2o = jax.random.uniform(k4, (1, output_size), jnp.float32, -bound, bound)
    w = jnp.concatenate([w_i2h, w_i2o], axis=1).astype(dtype)    # (C, H+O)
    b = jnp.concatenate([b_i2h, b_i2o], axis=1).astype(dtype)    # (1, H+O)
    return w[:input_size], w[input_size:], b                     # Wx, Wh, bias


def rnn_reference(xs, h0, wx, wh, b):
    """Pure-JAX reference: apply the PyTorch cell T times, keep last output."""
    H = h0.shape[1]
    wdt = wx.dtype
    wx32 = wx.astype(jnp.float32)
    wh32 = wh.astype(jnp.float32)
    b32 = b.astype(jnp.float32)
    h = h0.astype(jnp.float32)
    o = None
    for t in range(xs.shape[0]):
        z = (xs[t].astype(wdt).astype(jnp.float32) @ wx32
             + h.astype(wdt).astype(jnp.float32) @ wh32 + b32)
        h = jnp.tanh(z[:, :H])
        o = z[:, H:]
    return h, jax.nn.log_softmax(o, axis=-1)


if __name__ == "__main__":
    input_size, hidden_size, output_size = 26, 32, 2
    key = jax.random.PRNGKey(0)
    k_x1, k_x2, k_p = jax.random.split(key, 3)

    # ---- Case 1: single-step cell (the PyTorch module's forward), f32, B=2 ----
    B1 = 2
    params_f32 = init_params(k_p, input_size, hidden_size, output_size,
                             dtype=jnp.float32)
    x1 = jax.random.normal(k_x1, (B1, input_size), jnp.float32)
    h0_1 = jnp.zeros((B1, hidden_size), jnp.float32)      # init_hidden per row

    h1, logp1 = rnn_forward(x1, h0_1, *params_f32)
    jax.block_until_ready((h1, logp1))

    h1_ref, logp1_ref = rnn_reference(x1[None], h0_1, *params_f32)
    assert h1.shape == (B1, hidden_size) and logp1.shape == (B1, output_size)
    assert jnp.allclose(h1, h1_ref, atol=2e-3)
    assert jnp.allclose(logp1, logp1_ref, atol=2e-3)
    assert jnp.allclose(jnp.exp(logp1).sum(axis=1), 1.0, atol=1e-4)

    # ---- Case 2: fused sequence, batched, bf16 weights/inputs, batch grid ----
    T2, B2, BB2 = 8, 32, 16
    params_bf16 = init_params(k_p, input_size, hidden_size, output_size,
                              dtype=jnp.bfloat16)
    xs2 = jax.random.normal(k_x2, (T2, B2, input_size),
                            jnp.float32).astype(jnp.bfloat16)
    h0_2 = jnp.zeros((B2, hidden_size), jnp.float32)

    h2, logp2 = rnn_sequence_forward(xs2, h0_2, *params_bf16, batch_block=BB2)
    jax.block_until_ready((h2, logp2))

    h2_ref, logp2_ref = rnn_reference(xs2, h0_2, *params_bf16)
    assert h2.shape == (B2, hidden_size) and logp2.shape == (B2, output_size)
    assert jnp.allclose(h2, h2_ref, atol=5e-3)
    assert jnp.allclose(logp2, logp2_ref, atol=5e-3)
    assert jnp.allclose(jnp.exp(logp2).sum(axis=1), 1.0, atol=1e-3)

    print("KERNEL_OK")
</pallas_src>

<mosaic_0001>
module attributes {stable_mosaic.version = 11 : i64} {
  func.func @_rnn_seq_kernel(%arg0: i32, %arg1: i32, %arg2: memref<1x2x26xf32, #tpu.memory_space<vmem>>, %arg3: memref<2x32xf32, #tpu.memory_space<vmem>>, %arg4: memref<26x34xf32, #tpu.memory_space<vmem>>, %arg5: memref<32x34xf32, #tpu.memory_space<vmem>>, %arg6: memref<1x34xf32, #tpu.memory_space<vmem>>, %arg7: memref<2x32xf32, #tpu.memory_space<vmem>>, %arg8: memref<2x2xf32, #tpu.memory_space<vmem>>, %arg9: memref<2x32xf32, #tpu.memory_space<vmem>>) attributes {dimension_semantics = [#tpu.dimension_semantics<parallel>, #tpu.dimension_semantics<arbitrary>], iteration_bounds = array<i64: 1, 1>, scalar_prefetch = 0 : i64, scratch_operands = 1 : i64, tpu.core_type = #tpu.core_type<tc>, window_params = [{transform_indices = @transform_0, window_bounds = array<i64: 1, 2, 26>}, {transform_indices = @transform_1, window_bounds = array<i64: 2, 32>}, {pipeline_mode = #tpu.pipeline_mode<synchronous>, transform_indices = @transform_2, window_bounds = array<i64: 26, 34>}, {pipeline_mode = #tpu.pipeline_mode<synchronous>, transform_indices = @transform_3, window_bounds = array<i64: 32, 34>}, {pipeline_mode = #tpu.pipeline_mode<synchronous>, transform_indices = @transform_4, window_bounds = array<i64: 1, 34>}, {transform_indices = @transform_5, window_bounds = array<i64: 2, 32>}, {transform_indices = @transform_6, window_bounds = array<i64: 2, 2>}]} {
    %c0_i32 = arith.constant 0 : i32
    %0 = arith.cmpi eq, %arg1, %c0_i32 : i32
    %1 = arith.extui %0 : i1 to i32
    %c0_i32_0 = arith.constant 0 : i32
    %2 = arith.cmpi ne, %1, %c0_i32_0 : i32
    scf.if %2 {
      %c0_16 = arith.constant 0 : index
      %c0_17 = arith.constant 0 : index
      %20 = vector.load %arg3[%c0_16, %c0_17] : memref<2x32xf32, #tpu.memory_space<vmem>>, vector<2x32xf32>
      %c0_18 = arith.constant 0 : index
      %c0_19 = arith.constant 0 : index
      %21 = vector.load %arg9[%c0_18, %c0_19] : memref<2x32xf32, #tpu.memory_space<vmem>>, vector<2x32xf32>
      tpu.vector_store %arg9[%c0_18, %c0_19], %20 {strides = array<i32>} : memref<2x32xf32, #tpu.memory_space<vmem>>, vector<2x32xf32>,
    } else {
    }
    %c0 = arith.constant 0 : index
    %c0_1 = arith.constant 0 : index
    %c0_2 = arith.constant 0 : index
    %3 = vector.load %arg2[%c0, %c0_1, %c0_2] : memref<1x2x26xf32, #tpu.memory_space<vmem>>, vector<1x2x26xf32>
    %4 = vector.shape_cast %3 : vector<1x2x26xf32> to vector<2x26xf32>
    %c0_3 = arith.constant 0 : index
    %c0_4 = arith.constant 0 : index
    %5 = vector.load %arg9[%c0_3, %c0_4] : memref<2x32xf32, #tpu.memory_space<vmem>>, vector<2x32xf32>
    %c0_5 = arith.constant 0 : index
    %c0_6 = arith.constant 0 : index
    %6 = vector.load %arg4[%c0_5, %c0_6] : memref<26x34xf32, #tpu.memory_space<vmem>>, vector<26x34xf32>
    %cst = arith.constant dense<0.000000e+00> : vector<2x34xf32>
    %7 = tpu.matmul %4, %6, %cst {dimension_numbers = #tpu.dot_dimension_numbers<[1], [0], [0], [1], [0, 0, 1, 1], [], []>} : vector<2x26xf32>, vector<26x34xf32>, vector<2x34xf32> -> vector<2x34xf32>
    %c0_7 = arith.constant 0 : index
    %c0_8 = arith.constant 0 : index
    %8 = vector.load %arg5[%c0_7, %c0_8] : memref<32x34xf32, #tpu.memory_space<vmem>>, vector<32x34xf32>
    %cst_9 = arith.constant dense<0.000000e+00> : vector<2x34xf32>
    %9 = tpu.matmul %5, %8, %cst_9 {dimension_numbers = #tpu.dot_dimension_numbers<[1], [0], [0], [1], [0, 0, 1, 1], [], []>} : vector<2x32xf32>, vector<32x34xf32>, vector<2x34xf32> -> vector<2x34xf32>
    %10 = arith.addf %7, %9 : vector<2x34xf32>
    %c0_10 = arith.constant 0 : index
    %c0_11 = arith.constant 0 : index
    %11 = vector.load %arg6[%c0_10, %c0_11] : memref<1x34xf32, #tpu.memory_space<vmem>>, vector<1x34xf32>
    %12 = vector.broadcast %11 : vector<1x34xf32> to vector<2x34xf32>
    %13 = arith.addf %10, %12 : vector<2x34xf32>
    %14 = vector.extract_strided_slice %13 {offsets = [0, 0], sizes = [2, 32], strides = [1, 1]} : vector<2x34xf32> to vector<2x32xf32>
    %15 = math.tanh %14 : vector<2x32xf32>
    %c0_12 = arith.constant 0 : index
    %c0_13 = arith.constant 0 : index
    %16 = vector.load %arg9[%c0_12, %c0_13] : memref<2x32xf32, #tpu.memory_space<vmem>>, vector<2x32xf32>
    tpu.vector_store %arg9[%c0_12, %c0_13], %15 {strides = array<i32>} : memref<2x32xf32, #tpu.memory_space<vmem>>, vector<2x32xf32>,
    %c0_i32_14 = arith.constant 0 : i32
    %17 = arith.cmpi eq, %arg1, %c0_i32_14 : i32
    %18 = arith.extui %17 : i1 to i32
    %c0_i32_15 = arith.constant 0 : i32
    %19 = arith.cmpi ne, %18, %c0_i32_15 : i32
    scf.if %19 {
      %c0_16 = arith.constant 0 : index
      %c0_17 = arith.constant 0 : index
      %20 = vector.load %arg9[%c0_16, %c0_17] : memref<2x32xf32, #tpu.memory_space<vmem>>, vector<2x32xf32>
      %c0_18 = arith.constant 0 : index
      %c0_19 = arith.constant 0 : index
      %21 = vector.load %arg7[%c0_18, %c0_19] : memref<2x32xf32, #tpu.memory_space<vmem>>, vector<2x32xf32>
      tpu.vector_store %arg7[%c0_18, %c0_19], %20 {strides = array<i32>} : memref<2x32xf32, #tpu.memory_space<vmem>>, vector<2x32xf32>,
      %22 = vector.extract_strided_slice %13 {offsets = [0, 32], sizes = [2, 2], strides = [1, 1]} : vector<2x34xf32> to vector<2x2xf32>
      %cst_20 = arith.constant dense<0xFF800000> : vector<2xf32>
      %23 = vector.multi_reduction <maximumf>, %22, %cst_20 [1] : vector<2x2xf32> to vector<2xf32>
      %24 = vector.shape_cast %23 : vector<2xf32> to vector<2x1xf32>
      %25 = vector.broadcast %24 : vector<2x1xf32> to vector<2x2xf32>
      %26 = arith.subf %22, %25 : vector<2x2xf32>
      %27 = math.exp %26 : vector<2x2xf32>
      %cst_21 = arith.constant dense<0.000000e+00> : vector<2xf32>
      %28 = vector.multi_reduction <add>, %27, %cst_21 [1] : vector<2x2xf32> to vector<2xf32>
      %29 = vector.shape_cast %28 : vector<2xf32> to vector<2x1xf32>
      %30 = math.log %29 : vector<2x1xf32>
      %31 = vector.broadcast %30 : vector<2x1xf32> to vector<2x2xf32>
      %32 = arith.subf %26, %31 : vector<2x2xf32>
      %c0_22 = arith.constant 0 : index
      %c0_23 = arith.constant 0 : index
      %33 = vector.load %arg8[%c0_22, %c0_23] : memref<2x2xf32, #tpu.memory_space<vmem>>, vector<2x2xf32>
      tpu.vector_store %arg8[%c0_22, %c0_23], %32 {strides = array<i32>} : memref<2x2xf32, #tpu.memory_space<vmem>>, vector<2x2xf32>,
    } else {
    }
    return
  }
  func.func @transform_0(%arg0: i32, %arg1: i32) -> (i32, i32, i32) {
    %c0_i32 = arith.constant 0 : i32
    %c0_i32_0 = arith.constant 0 : i32
    return %arg1, %arg0, %c0_i32 : i32, i32, i32
  }
  func.func @transform_1(%arg0: i32, %arg1: i32) -> (i32, i32) {
    %c0_i32 = arith.constant 0 : i32
    %c0_i32_0 = arith.constant 0 : i32
    return %arg0, %c0_i32 : i32, i32
  }
  func.func @transform_2(%arg0: i32, %arg1: i32) -> (i32, i32) {
    %c0_i32 = arith.constant 0 : i32
    %c0_i32_0 = arith.constant 0 : i32
    %c0_i32_1 = arith.constant 0 : i32
    return %c0_i32, %c0_i32_0 : i32, i32
  }
  func.func @transform_3(%arg0: i32, %arg1: i32) -> (i32, i32) {
    %c0_i32 = arith.constant 0 : i32
    %c0_i32_0 = arith.constant 0 : i32
    %c0_i32_1 = arith.constant 0 : i32
    return %c0_i32, %c0_i32_0 : i32, i32
  }
  func.func @transform_4(%arg0: i32, %arg1: i32) -> (i32, i32) {
    %c0_i32 = arith.constant 0 : i32
    %c0_i32_0 = arith.constant 0 : i32
    %c0_i32_1 = arith.constant 0 : i32
    return %c0_i32, %c0_i32_0 : i32, i32
  }
  func.func @transform_5(%arg0: i32, %arg1: i32) -> (i32, i32) {
    %c0_i32 = arith.constant 0 : i32
    %c0_i32_0 = arith.constant 0 : i32
    return %arg0, %c0_i32 : i32, i32
  }
  func.func @transform_6(%arg0: i32, %arg1: i32) -> (i32, i32) {
    %c0_i32 = arith.constant 0 : i32
    %c0_i32_0 = arith.constant 0 : i32
    return %arg0, %c0_i32 : i32, i32
  }
}

</mosaic_0001>

<llo_original>
// kernel: tpu_custom_call.1
$region0: #{tpu_custom_call.1}
  #allocation0 [shape = 'u32[]', space=smem, size = 0x4, offset = 0x4, fixed_abs, tag = 'smem constant byte address 0x4 - core index']
  #allocation1 [shape = 'u32[72,128]{1,0:T(1,128)}', space=vmem, size = 0x9000, scoped, tag = 'internal scratch']
  #allocation2 [shape = 'f32[2,32]{1,0:T(2,128)}', space=vmem, size = 0x400, scoped, tag = 'scratch operand']
  %s0 = inlined_call_operand.hbm [shape: f32[1,2,26], index: 0, kind: input, shape index: {}]
  %s1 = inlined_call_operand.hbm [shape: f32[2,32], index: 1, kind: input, shape index: {}]
  %s2 = inlined_call_operand.hbm [shape: f32[26,34], index: 2, kind: input, shape index: {}]
  %s3 = inlined_call_operand.hbm [shape: f32[32,34], index: 3, kind: input, shape index: {}]
  %s4 = inlined_call_operand.vmem [shape: f32[1,34], index: 4, kind: input, shape index: {}]
  %s5 = inlined_call_operand.hbm [shape: f32[2,32], index: 5, kind: output, shape index: {0}]
  %s6 = inlined_call_operand.hbm [shape: f32[2,2], index: 6, kind: output, shape index: {1}]
  %7 = xla_tuple %s5, %s6
  %s8 = sld [smem:[#allocation0]]
  $region62: #{tpu_custom_call.1} parent=0
    _
  %s10 = ssub.s32 1, %s8
  %s11 = scalar_select 0, %s10, %s8
  $region1: #{tpu_custom_call.1} parent=0
    #allocation3 [shape = 'u8[1024]{0}', space=vmem, size = 0x400, scoped, tag = 'input window, operand 0, single buffered']
    #allocation4 [shape = 's32[1]{0}', space=sflag, size = 0x4, scoped, tag = 'scoped memory for tpu_custom_call.1']
    #allocation5 [shape = 's32[1]{0}', space=sflag, size = 0x4, scoped, tag = 'scoped memory for tpu_custom_call.1']
    #allocation6 [shape = 'u8[1024]{0}', space=vmem, size = 0x400, scoped, tag = 'input window, operand 1, single buffered']
    #allocation7 [shape = 's32[1]{0}', space=sflag, size = 0x4, scoped, tag = 'scoped memory for tpu_custom_call.1']
    #allocation8 [shape = 'u8[16384]{0}', space=vmem, size = 0x4000, scoped, tag = 'input window, operand 2, single buffered']
    #allocation9 [shape = 'u8[16384]{0}', space=vmem, size = 0x4000, scoped, tag = 'input window, operand 3, single buffered']
    #allocation10 [shape = 's32[1]{0}', space=sflag, size = 0x4, scoped, tag = 'scoped memory for tpu_custom_call.1']
    #allocation11 [shape = 'u8[1024]{0}', space=vmem, size = 0x400, scoped, tag = 'output window, operand 0, single buffered']
    #allocation12 [shape = 'u8[1024]{0}', space=vmem, size = 0x400, scoped, tag = 'output window, operand 1, single buffered']
    #allocation13 [shape = 's32[1]{0}', space=sflag, size = 0x4, scoped, tag = 'scoped memory for tpu_custom_call.1']
    %12 = vsyncpa [#allocation4], 0
    %13 = vsyncpa [#allocation7], 0
    %14 = vsyncpa [#allocation10], 0
    %15 = vsyncpa [#allocation5], 0
    %16 = vsyncpa [#allocation13], 0
    // Predicated region
    $region2: #{tpu_custom_call.1} parent=1 // pred_check
      _
    $region3: #{tpu_custom_call.1} parent=1 // pred_check_branch
      %18 = sbr.rel (0) target = $region5
    $region4: #{tpu_custom_call.1} parent=1 // pred_region
      %20 = vsyncadd [#allocation4], 0
      %s22 = sshll.u32 %s0, 4
      %s23 = int_to_ptr.hbm [resolvable:$true] %s22
      %s24 = sshll.u32 [#allocation3], 4
      %s25 = int_to_ptr.vmem [resolvable:$true] %s24
      %27 = dma.hbm_to_vmem [thread:$0]  %s23, 32, %s25, [#allocation4]
    $region5: #{tpu_custom_call.1} parent=1 // pred_fallthru
      _
    // Predicated region
    $region6: #{tpu_custom_call.1} parent=1 // pred_check
      _
    $region7: #{tpu_custom_call.1} parent=1 // pred_check_branch
      %29 = sbr.rel (0) target = $region9
    $region8: #{tpu_custom_call.1} parent=1 // pred_region
      %31 = vsyncadd [#allocation7], 0
      %s33 = sshll.u32 %s1, 4
      %s34 = int_to_ptr.hbm [resolvable:$true] %s33
      %s35 = sshll.u32 [#allocation6], 4
      %s36 = int_to_ptr.vmem [resolvable:$true] %s35
      %38 = dma.hbm_to_vmem [thread:$0]  %s34, 32, %s36, [#allocation7]
    $region9: #{tpu_custom_call.1} parent=1 // pred_fallthru
      _
    // Predicated region
    $region10: #{tpu_custom_call.1} parent=1 // pred_check
      _
    $region11: #{tpu_custom_call.1} parent=1 // pred_check_branch
      %40 = sbr.rel (0) target = $region13
    $region12: #{tpu_custom_call.1} parent=1 // pred_region
      %42 = vsyncadd [#allocation7], 0
      %s43 = sshll.u32 %s2, 4
      %s44 = int_to_ptr.hbm [resolvable:$true] %s43
      %s45 = sshll.u32 [#allocation8], 4
      %s46 = int_to_ptr.vmem [resolvable:$true] %s45
      %51 = dma.hbm_to_vmem [thread:$0]  %s44, 512, %s46, [#allocation7], 128, 128, 8
    $region13: #{tpu_custom_call.1} parent=1 // pred_fallthru
      _
    // Predicated region
    $region14: #{tpu_custom_call.1} parent=1 // pred_check
      _
    $region15: #{tpu_custom_call.1} parent=1 // pred_check_branch
      %53 = sbr.rel (0) target = $region17
    $region16: #{tpu_custom_call.1} parent=1 // pred_region
      %55 = vsyncadd [#allocation10], 0
      %s56 = sshll.u32 %s3, 4
      %s57 = int_to_ptr.hbm [resolvable:$true] %s56
      %s58 = sshll.u32 [#allocation9], 4
      %s59 = int_to_ptr.vmem [resolvable:$true] %s58
      %64 = dma.hbm_to_vmem [thread:$0]  %s57, 512, %s59, [#allocation10], 128, 128, 8
    $region17: #{tpu_custom_call.1} parent=1 // pred_fallthru
      _
    // Predicated region
    $region18: #{tpu_custom_call.1} parent=1 // pred_check
      _
    $region19: #{tpu_custom_call.1} parent=1 // pred_check_branch
      %66 = sbr.rel (0) target = $region21
    $region20: #{tpu_custom_call.1} parent=1 // pred_region
      _
    $region21: #{tpu_custom_call.1} parent=1 // pred_fallthru
      _
    // Predicated region
    $region22: #{tpu_custom_call.1} parent=1 // pred_check
      _
    $region23: #{tpu_custom_call.1} parent=1 // pred_check_branch
      %68 = sbr.rel (0) target = $region25
    $region24: #{tpu_custom_call.1} parent=1 // pred_region
      %70 = dma.done [#allocation4], 32
    $region25: #{tpu_custom_call.1} parent=1 // pred_fallthru
      _
    // Predicated region
    $region26: #{tpu_custom_call.1} parent=1 // pred_check
      _
    $region27: #{tpu_custom_call.1} parent=1 // pred_check_branch
      %72 = sbr.rel (0) target = $region29
    $region28: #{tpu_custom_call.1} parent=1 // pred_region
      %74 = dma.done [#allocation7], 32
    $region29: #{tpu_custom_call.1} parent=1 // pred_fallthru
      _
    // Predicated region
    $region30: #{tpu_custom_call.1} parent=1 // pred_check
      _
    $region31: #{tpu_custom_call.1} parent=1 // pred_check_branch
      %76 = sbr.rel (0) target = $region33
    $region32: #{tpu_custom_call.1} parent=1 // pred_region
      %78 = dma.done [#allocation7], 512
    $region33: #{tpu_custom_call.1} parent=1 // pred_fallthru
      _
    // Predicated region
    $region34: #{tpu_custom_call.1} parent=1 // pred_check
      _
    $region35: #{tpu_custom_call.1} parent=1 // pred_check_branch
      %80 = sbr.rel (0) target = $region37
    $region36: #{tpu_custom_call.1} parent=1 // pred_region
      %82 = dma.done [#allocation10], 512
    $region37: #{tpu_custom_call.1} parent=1 // pred_fallthru
      _
    %p83 = scmp.eq.s32.totalorder 0, 0
    // Predicated region
    $region38: #{tpu_custom_call.1} parent=1 // pred_check
      %p84 = pneg %p83
    $region39: #{tpu_custom_call.1} parent=1 // pred_check_branch
      %86 = sbr.rel (%p84) target = $region41
    $region40: #{tpu_custom_call.1} parent=1 // pred_region
      %v87 = vld [vmem:[#allocation6] sm:$0x3]
      %vm88 = vcmask 254976
      %89 = vst.msk [vmem:[#allocation2] sm:$0x3] %vm88, %v87
    $region41: #{tpu_custom_call.1} parent=1 // pred_fallthru
      _
    %v90 = vld [vmem:[#allocation3] sm:$0x3]
    %v91 = vld [vmem:[#allocation2] sm:$0x3]
    %v92 = vld [vmem:[#allocation8] sm:$0xff]
    %v93 = vld [vmem:[#allocation8 + $0x8] sm:$0xff]
    %v94 = vld [vmem:[#allocation8 + $0x10] sm:$0xff]
    %v95 = vld [vmem:[#allocation8 + $0x18] sm:$0x3]
    %v96 = vld [vmem:[#allocation9] sm:$0xff]
    %v97 = vld [vmem:[#allocation9 + $0x8] sm:$0xff]
    %v98 = vld [vmem:[#allocation9 + $0x10] sm:$0xff]
    %v99 = vld [vmem:[#allocation9 + $0x18] sm:$0xff]
    %vm100 = vcmask 261120
    %v102 = vsel %vm100, %v91, 0
    %104 = vmatpush.msra.mxu0 0.0
    %105 = vmatpush.msra.mxu0 0.0
    %106 = vmatpush.msra.mxu0 0.0
    %107 = vmatpush.msra.mxu0 0.0
    %108 = vmatpush.msra.mxu0 0.0
    %109 = vmatpush.msra.mxu0 0.0
    %110 = vmatpush.msra.mxu0 0.0
    %111 = vmatpush.msra.mxu0 0.0
    %112 = vmatpush.msra.mxu0 0.0
    %113 = vmatpush.msra.mxu0 0.0
    %114 = vmatpush.msra.mxu0 0.0
    %115 = vmatpush.msra.mxu0 0.0
    %116 = vmatpush.msra.mxu0 %v99
    %117 = vmatpush.msra.mxu0 %v98
    %118 = vmatpush.msra.mxu0 %v97
    %119 = vmatpush.msra.mxu0 %v96
    %120 = vmatmul.f32.gmra.mxu0 %v102
    %v121 = vpop.f32.mrf.mxu0
    %v122 = vadd.f32 0.0, %v121
    %123 = vdwg.mxu0
    %vm124 = vcmask 211968
    %v126 = vsel %vm124, %v90, 0
    %vm128 = vcmask 1041408
    %v130 = vsel %vm128, %v95, 0
    %132 = vmatpush.msra.mxu0 0.0
    %133 = vmatpush.msra.mxu0 0.0
    %134 = vmatpush.msra.mxu0 0.0
    %135 = vmatpush.msra.mxu0 0.0
    %136 = vmatpush.msra.mxu0 0.0
    %137 = vmatpush.msra.mxu0 0.0
    %138 = vmatpush.msra.mxu0 0.0
    %139 = vmatpush.msra.mxu0 0.0
    %140 = vmatpush.msra.mxu0 0.0
    %141 = vmatpush.msra.mxu0 0.0
    %142 = vmatpush.msra.mxu0 0.0
    %143 = vmatpush.msra.mxu0 0.0
    %144 = vmatpush.msra.mxu0 %v130
    %145 = vmatpush.msra.mxu0 %v94
    %146 = vmatpush.msra.mxu0 %v93
    %147 = vmatpush.msra.mxu0 %v92
    %148 = vmatmul.f32.gmra.mxu0 %v126
    %v149 = vpop.f32.mrf.mxu0
    %v150 = vadd.f32 %v122, %v149
    %151 = vdwg.mxu0
    %v152 = vld [vmem:[%s4] sm:$0x1]
    %v154 = vperm.slane %v152, 0
    %v156 = vadd.f32 %v150, %v154
    %v157 = vtanh.pop %v156
    %vm158 = vcmask 254976
    %159 = vst.msk [vmem:[#allocation2] sm:$0x3] %vm158, %v157
    // Predicated region
    $region42: #{tpu_custom_call.1} parent=1 // pred_check
      %p160 = pneg %p83
    $region43: #{tpu_custom_call.1} parent=1 // pred_check_branch
      %162 = sbr.rel (%p160) target = $region45
    $region44: #{tpu_custom_call.1} parent=1 // pred_region
      %v163 = vld [vmem:[#allocation2] sm:$0x3]
      %164 = vst.msk [vmem:[#allocation11] sm:$0x3] %vm158, %v163
      %vm165 = vcmask 271616
      %v166 = vsel %vm165, %v156, -inf
      %167 = vmax.xlane.f32.xlu0 %v166
      %v168 = vpop.xlane.xlu0 %167
      %v169 = vsub.f32 %v156, %v168
      %v170 = vmul.f32 %v169, 1.442695
      %v171 = vpow.pop %v170
      %173 = vrot.lane.b32.xlu0 %v171, 96
      %v174 = vpop.permute.xlu0 %173
      %vm176 = vcmask 9216
      %v177 = vsel %vm176, %v174, 0.0
      %178 = vadd.xlane.f32.xlu0 %v177
      %v179 = vpop.xlane.xlu0 %178
      %v180 = vlog2.pop %v179
      %v181 = vmul.f32 %v180, 0.6931472
      %v182 = vsub.f32 %v169, %v181
      %184 = vrot.lane.b32.xlu0 %v182, 96
      %v185 = vpop.permute.xlu0 %184
      %187 = vst.msk [vmem:[#allocation12] sm:$0x3] %vm176, %v185
    $region45: #{tpu_custom_call.1} parent=1 // pred_fallthru
      _
    // Predicated region
    $region46: #{tpu_custom_call.1} parent=1 // pred_check
      _
    $region47: #{tpu_custom_call.1} parent=1 // pred_check_branch
      %189 = sbr.rel (0) target = $region49
    $region48: #{tpu_custom_call.1} parent=1 // pred_region
      %191 = vsyncadd [#allocation5], 0
      %s193 = sshll.u32 [#allocation11], 4
      %s194 = int_to_ptr.vmem [resolvable:$true] %s193
      %s195 = sshll.u32 %s5, 4
      %s196 = int_to_ptr.hbm [resolvable:$true] %s195
      %198 = dma.vmem_to_hbm [thread:$0]  %s194, 32, %s196, [#allocation5]
    $region49: #{tpu_custom_call.1} parent=1 // pred_fallthru
      _
    // Predicated region
    $region50: #{tpu_custom_call.1} parent=1 // pred_check
      _
    $region51: #{tpu_custom_call.1} parent=1 // pred_check_branch
      %200 = sbr.rel (0) target = $region53
    $region52: #{tpu_custom_call.1} parent=1 // pred_region
      %202 = vsyncadd [#allocation13], 0
      %s204 = sshll.u32 [#allocation12], 4
      %s205 = int_to_ptr.vmem [resolvable:$true] %s204
      %s206 = sshll.u32 %s6, 4
      %s207 = int_to_ptr.hbm [resolvable:$true] %s206
      %209 = dma.vmem_to_hbm [thread:$0]  %s205, 32, %s207, [#allocation13]
    $region53: #{tpu_custom_call.1} parent=1 // pred_fallthru
      _
    // Predicated region
    $region54: #{tpu_custom_call.1} parent=1 // pred_check
      _
    $region55: #{tpu_custom_call.1} parent=1 // pred_check_branch
      %211 = sbr.rel (0) target = $region57
    $region56: #{tpu_custom_call.1} parent=1 // pred_region
      %213 = dma.done [#allocation5], 32
    $region57: #{tpu_custom_call.1} parent=1 // pred_fallthru
      _
    // Predicated region
    $region58: #{tpu_custom_call.1} parent=1 // pred_check
      _
    $region59: #{tpu_custom_call.1} parent=1 // pred_check_branch
      %215 = sbr.rel (0) target = $region61
    $region60: #{tpu_custom_call.1} parent=1 // pred_region
      %217 = dma.done [#allocation13], 32
    $region61: #{tpu_custom_call.1} parent=1 // pred_fallthru
      _
    %218 = vsyncpa [#allocation4], 1
    %219 = vsyncpa [#allocation7], 1
    %220 = vsyncpa [#allocation10], 1
    %221 = vsyncpa [#allocation5], 1
    %222 = vsyncpa [#allocation13], 1

</llo_original>
